<compile_context>
chip_gen: v7x
topology: tpu7x:2x2x1
jax: 0.10.0
libtpu: 0.0.40
codegen_flags: <defaults>
</compile_context>

<pallas_src>
import functools

import jax
import jax.numpy as jnp
from jax.experimental import pallas as pl
from jax.experimental.pallas import tpu as pltpu

LAMBD = 1.0  # softshrink lambda (module default lambd=1)


def _round_up(x, mult):
    return ((x + mult - 1) // mult) * mult


def _softshrink(z, thr):
    # softshrink(z, thr) == z - clip(z, -thr, thr): min, max, sub (3 VALU ops).
    # Equals eta * softshrink(z / eta, lambd) for thr = eta * lambd, eta > 0.
    return z - jnp.clip(z, -thr, thr)


def lista_kernel(gam_ref, thr_ref, y_ref, wa_ref, wb_ref, x_ref, *, T):
    y = y_ref[...]           # (TB, NP)   fused [yr | yi], lane-padded
    wa = wa_ref[...]         # (NP, MP)   stacked/padded complex A^T
    wb = wb_ref[...]         # (MP, MP)   stacked/padded complex B^T

    # Ay computed once, reused every iteration (single fused matmul, f32 acc).
    ay = jnp.dot(y, wa, preferred_element_type=jnp.float32)      # (TB, MP) f32

    # Hoist all scalar SMEM reads up front.
    g = [gam_ref[i] for i in range(T + 1)]
    thr = [thr_ref[i] for i in range(T + 1)]

    x = _softshrink(g[0] * ay, thr[0])

    # T is small and static -> fully unrolled (LLO can interleave MXU pushes
    # with the previous iteration's VALU shrink).
    for i in range(1, T + 1):
        bx = jnp.dot(x.astype(wb.dtype), wb,
                     preferred_element_type=jnp.float32)          # (TB, MP)
        x = _softshrink(x + g[i] * (ay - bx), thr[i])

    x_ref[...] = x.astype(x_ref.dtype)                            # lane-dense slab


def _compute_vmem_limit(tb, np_pad, mp, mm_bytes):
    """Scoped-VMEM budget from actual tile sizes (2-deep auto double-buffering
    on every BlockSpec operand) plus f32 working set and compiler headroom."""
    dbuf = 2
    y_b = dbuf * tb * np_pad * mm_bytes
    wa_b = dbuf * np_pad * mp * mm_bytes
    wb_b = dbuf * mp * mp * mm_bytes
    out_b = dbuf * tb * mp * 4
    work = 8 * tb * mp * 4                      # ay, x, bx + live temporaries
    total = int(1.5 * (y_b + wa_b + wb_b + out_b + work))
    # Floor at 16 MiB (<= default scoped limit on all generations), cap at the
    # v7x physical VMEM of 64 MiB.
    return max(16 * 1024 * 1024, min(total, 64 * 1024 * 1024))


def lista_c_forward(y, A, B, gammas, etas, T, *, matmul_dtype=jnp.bfloat16):
    """y: (batch, n, 2) f32.  A: (2, m, n).  B: (2, m, m).
    gammas/etas: (T+1, 1, 1).  Returns x: (batch, m, 2) f32.

    matmul_dtype: operand dtype for the MXU matmuls (bf16 default — MXU-native
    on v5e/v6e/v7x; accumulation is always f32). Pass jnp.float32 for a
    bit-tight match to the reference formulation.
    """
    bsz, n, _ = y.shape
    m = A.shape[1]

    # The threshold rewrite softshrink(z, eta*lambd) requires eta > 0 (the
    # original division-based shrink also breaks at eta == 0).
    if not isinstance(etas, jax.core.Tracer):
        if bool(jnp.any(jnp.asarray(etas) <= 0)):
            raise ValueError("lista_c_forward requires etas > 0")

    # ---- build fused real-embedding weights (wrapper-side, tiny) ------------
    ar, ai = jnp.transpose(A[0]), jnp.transpose(A[1])     # (n, m)
    br, bi = jnp.transpose(B[0]), jnp.transpose(B[1])     # (m, m)
    wa = jnp.concatenate(
        [jnp.concatenate([ar, ai], axis=1),
         jnp.concatenate([-ai, ar], axis=1)], axis=0)     # (2n, 2m)
    wb = jnp.concatenate(
        [jnp.concatenate([br, bi], axis=1),
         jnp.concatenate([-bi, br], axis=1)], axis=0)     # (2m, 2m)

    # Pad the state/output lane dim (2m) and the observation lane dim (2n) to
    # multiples of 128: unmasked stores, full vreg lanes, aligned matmul K.
    # Padded columns/rows stay exactly zero through the whole iteration.
    mp = _round_up(2 * m, 128)
    np_pad = _round_up(2 * n, 128)
    wa = jnp.pad(wa, ((0, np_pad - 2 * n), (0, mp - 2 * m)))   # (np_pad, mp)
    wb = jnp.pad(wb, ((0, mp - 2 * m), (0, mp - 2 * m)))       # (mp, mp)

    # Fused observation [yr | yi], lane-padded.
    yf = jnp.concatenate([y[..., 0], y[..., 1]], axis=-1)       # (bsz, 2n)
    yf = jnp.pad(yf, ((0, 0), (0, np_pad - 2 * n)))             # (bsz, np_pad)

    # ---- batch tiling --------------------------------------------------------
    # Target >= 4 grid steps (2 TensorCores on v7x x double-buffer depth) so
    # the batch axis can shard across cores and the Y/X DMAs pipeline; cap the
    # tile at 256 rows (fits comfortably in v7x's 64 MiB alongside the
    # intermediates; v5e/v6e with 128 MiB could go larger).
    TARGET_STEPS = 4
    bsz_pad = _round_up(bsz, 8)
    tb = max(8, min(256, _round_up(pl.cdiv(bsz_pad, TARGET_STEPS), 8)))
    # Guarantee at least 2 grid steps; waste is bounded by < 2*tb zero rows.
    bsz_pad = max(_round_up(bsz_pad, tb), 2 * tb)
    if bsz_pad != bsz:
        yf = jnp.pad(yf, ((0, bsz_pad - bsz), (0, 0)))
    grid = (bsz_pad // tb,)

    # Matmul operand dtype (bf16 default); accumulation stays f32 in-kernel.
    yf = yf.astype(matmul_dtype)
    wa = wa.astype(matmul_dtype)
    wb = wb.astype(matmul_dtype)
    mm_bytes = jnp.dtype(matmul_dtype).itemsize

    # Scalars: gamma and precomputed threshold eta*lambd, in SMEM (prefetched).
    gam = gammas.reshape(-1).astype(jnp.float32)           # (T+1,)
    thr = (LAMBD * etas.reshape(-1)).astype(jnp.float32)   # (T+1,)

    grid_spec = pltpu.PrefetchScalarGridSpec(
        num_scalar_prefetch=2,
        grid=grid,
        in_specs=[
            pl.BlockSpec((tb, np_pad), lambda i, *_: (i, 0)),   # Y tile
            pl.BlockSpec((np_pad, mp), lambda i, *_: (0, 0)),   # W_A resident
            pl.BlockSpec((mp, mp), lambda i, *_: (0, 0)),       # W_B resident
        ],
        out_specs=pl.BlockSpec((tb, mp), lambda i, *_: (i, 0)),
    )

    x_fused = pl.pallas_call(
        functools.partial(lista_kernel, T=T),
        out_shape=jax.ShapeDtypeStruct((bsz_pad, mp), jnp.float32),
        grid_spec=grid_spec,
        compiler_params=pltpu.CompilerParams(
            dimension_semantics=("parallel",),
            vmem_limit_bytes=_compute_vmem_limit(tb, np_pad, mp, mm_bytes),
        ),
    )(gam, thr, yf, wa, wb)

    xr = x_fused[:bsz, :m]
    xi = x_fused[:bsz, m:2 * m]
    return jnp.stack([xr, xi], axis=-1)                    # (batch, m, 2)


def _reference(y, A, B, gammas, etas, T):
    # Pure-JAX reference with the exact PyTorch formulation
    # (division-based shrink, 4 separate real matmuls, f32 throughout).
    def shrink(z, eta):
        u = z / eta
        soft = jnp.where(u > LAMBD, u - LAMBD,
                         jnp.where(u < -LAMBD, u + LAMBD, 0.0))
        return eta * soft

    yr, yi = y[..., 0], y[..., 1]

    def cdot(xr, xi, H):
        hr, hi = H[0].T, H[1].T
        return xr @ hr - xi @ hi, xr @ hi + xi @ hr

    ay_r, ay_i = cdot(yr, yi, A)
    g, e = gammas[0, 0, 0], etas[0, 0, 0]
    xr, xi = shrink(g * ay_r, e), shrink(g * ay_i, e)
    for i in range(1, T + 1):
        bx_r, bx_i = cdot(xr, xi, B)
        g, e = gammas[i, 0, 0], etas[i, 0, 0]
        xr = shrink(xr - g * bx_r + g * ay_r, e)
        xi = shrink(xi - g * bx_i + g * ay_i, e)
    return jnp.stack([xr, xi], axis=-1)


def _xavier_uniform(key, shape):
    # PyTorch xavier_uniform_ fan computation for a 3-D tensor (c, out, in).
    receptive = 1
    for s in shape[2:]:
        receptive *= s
    fan_in = shape[1] * receptive
    fan_out = shape[0] * receptive
    bound = (6.0 / (fan_in + fan_out)) ** 0.5
    return jax.random.uniform(key, shape, jnp.float32, minval=-bound, maxval=bound)


if __name__ == "__main__":
    m, n, T = 32, 16, 10
    batch = 8

    key = jax.random.PRNGKey(0)
    k_a, k_b, k_y = jax.random.split(key, 3)

    A = _xavier_uniform(k_a, (2, m, n))                    # nn.Parameter A
    B = _xavier_uniform(k_b, (2, m, m))                    # nn.Parameter B
    etas = 0.1 * jnp.ones((T + 1, 1, 1), jnp.float32)      # nn.Parameter etas
    gammas = jnp.ones((T + 1, 1, 1), jnp.float32)          # nn.Parameter gammas

    y = jax.random.normal(k_y, (batch, n, 2), jnp.float32)  # observation (re/im)

    x_ref = _reference(y, A, B, gammas, etas, T)

    # Default path: bf16 matmul operands (MXU-native on all generations).
    x_bf16 = lista_c_forward(y, A, B, gammas, etas, T)
    x_bf16 = jax.block_until_ready(x_bf16)
    assert x_bf16.shape == (batch, m, 2)

    # f32 operand path for the tight correctness check.
    x_f32 = lista_c_forward(y, A, B, gammas, etas, T, matmul_dtype=jnp.float32)
    x_f32 = jax.block_until_ready(x_f32)
    assert x_f32.shape == (batch, m, 2)
    assert jnp.allclose(x_f32, x_ref, rtol=1e-4, atol=1e-4), \
        "f32 kernel mismatch vs reference"

    # bf16 default path: loose norm-relative sanity check (operand rounding
    # compounds over the T=10 iterative-refinement steps).
    num = jnp.sqrt(jnp.sum((x_bf16 - x_ref) ** 2))
    den = jnp.sqrt(jnp.sum(x_ref ** 2)) + 1e-12
    rel = float(num / den)
    assert rel < 0.15, f"bf16 kernel relative error too large: {rel}"

    print("KERNEL_OK")
</pallas_src>

<mosaic_0001>
module attributes {stable_mosaic.version = 11 : i64} {
  func.func @lista_kernel(%arg0: i32, %arg1: memref<11xf32, #tpu.memory_space<smem>>, %arg2: memref<11xf32, #tpu.memory_space<smem>>, %arg3: memref<8x128xbf16, #tpu.memory_space<vmem>>, %arg4: memref<128x128xbf16, #tpu.memory_space<vmem>>, %arg5: memref<128x128xbf16, #tpu.memory_space<vmem>>, %arg6: memref<8x128xf32, #tpu.memory_space<vmem>>) attributes {dimension_semantics = [#tpu.dimension_semantics<parallel>], iteration_bounds = array<i64: 2>, scalar_prefetch = 2 : i64, scratch_operands = 0 : i64, tpu.core_type = #tpu.core_type<tc>, window_params = [{transform_indices = @transform_0, window_bounds = array<i64: 8, 128>}, {pipeline_mode = #tpu.pipeline_mode<synchronous>, transform_indices = @transform_1, window_bounds = array<i64: 128, 128>}, {pipeline_mode = #tpu.pipeline_mode<synchronous>, transform_indices = @transform_2, window_bounds = array<i64: 128, 128>}, {transform_indices = @transform_3, window_bounds = array<i64: 8, 128>}]} {
    %c0 = arith.constant 0 : index
    %c0_0 = arith.constant 0 : index
    %0 = vector.load %arg3[%c0, %c0_0] : memref<8x128xbf16, #tpu.memory_space<vmem>>, vector<8x128xbf16>
    %c0_1 = arith.constant 0 : index
    %c0_2 = arith.constant 0 : index
    %1 = vector.load %arg4[%c0_1, %c0_2] : memref<128x128xbf16, #tpu.memory_space<vmem>>, vector<128x128xbf16>
    %c0_3 = arith.constant 0 : index
    %c0_4 = arith.constant 0 : index
    %2 = vector.load %arg5[%c0_3, %c0_4] : memref<128x128xbf16, #tpu.memory_space<vmem>>, vector<128x128xbf16>
    %cst = arith.constant dense<0.000000e+00> : vector<8x128xf32>
    %3 = tpu.matmul %0, %1, %cst {dimension_numbers = #tpu.dot_dimension_numbers<[1], [0], [0], [1], [0, 0, 1, 1], [], []>} : vector<8x128xbf16>, vector<128x128xbf16>, vector<8x128xf32> -> vector<8x128xf32>
    %c0_5 = arith.constant 0 : index
    %4 = memref.load %arg1[%c0_5] : memref<11xf32, #tpu.memory_space<smem>>
    %c1 = arith.constant 1 : index
    %5 = memref.load %arg1[%c1] : memref<11xf32, #tpu.memory_space<smem>>
    %c2 = arith.constant 2 : index
    %6 = memref.load %arg1[%c2] : memref<11xf32, #tpu.memory_space<smem>>
    %c3 = arith.constant 3 : index
    %7 = memref.load %arg1[%c3] : memref<11xf32, #tpu.memory_space<smem>>
    %c4 = arith.constant 4 : index
    %8 = memref.load %arg1[%c4] : memref<11xf32, #tpu.memory_space<smem>>
    %c5 = arith.constant 5 : index
    %9 = memref.load %arg1[%c5] : memref<11xf32, #tpu.memory_space<smem>>
    %c6 = arith.constant 6 : index
    %10 = memref.load %arg1[%c6] : memref<11xf32, #tpu.memory_space<smem>>
    %c7 = arith.constant 7 : index
    %11 = memref.load %arg1[%c7] : memref<11xf32, #tpu.memory_space<smem>>
    %c8 = arith.constant 8 : index
    %12 = memref.load %arg1[%c8] : memref<11xf32, #tpu.memory_space<smem>>
    %c9 = arith.constant 9 : index
    %13 = memref.load %arg1[%c9] : memref<11xf32, #tpu.memory_space<smem>>
    %c10 = arith.constant 10 : index
    %14 = memref.load %arg1[%c10] : memref<11xf32, #tpu.memory_space<smem>>
    %c0_6 = arith.constant 0 : index
    %15 = memref.load %arg2[%c0_6] : memref<11xf32, #tpu.memory_space<smem>>
    %c1_7 = arith.constant 1 : index
    %16 = memref.load %arg2[%c1_7] : memref<11xf32, #tpu.memory_space<smem>>
    %c2_8 = arith.constant 2 : index
    %17 = memref.load %arg2[%c2_8] : memref<11xf32, #tpu.memory_space<smem>>
    %c3_9 = arith.constant 3 : index
    %18 = memref.load %arg2[%c3_9] : memref<11xf32, #tpu.memory_space<smem>>
    %c4_10 = arith.constant 4 : index
    %19 = memref.load %arg2[%c4_10] : memref<11xf32, #tpu.memory_space<smem>>
    %c5_11 = arith.constant 5 : index
    %20 = memref.load %arg2[%c5_11] : memref<11xf32, #tpu.memory_space<smem>>
    %c6_12 = arith.constant 6 : index
    %21 = memref.load %arg2[%c6_12] : memref<11xf32, #tpu.memory_space<smem>>
    %c7_13 = arith.constant 7 : index
    %22 = memref.load %arg2[%c7_13] : memref<11xf32, #tpu.memory_space<smem>>
    %c8_14 = arith.constant 8 : index
    %23 = memref.load %arg2[%c8_14] : memref<11xf32, #tpu.memory_space<smem>>
    %c9_15 = arith.constant 9 : index
    %24 = memref.load %arg2[%c9_15] : memref<11xf32, #tpu.memory_space<smem>>
    %c10_16 = arith.constant 10 : index
    %25 = memref.load %arg2[%c10_16] : memref<11xf32, #tpu.memory_space<smem>>
    %26 = vector.broadcast %4 : f32 to vector<8x128xf32>
    %27 = arith.mulf %26, %3 : vector<8x128xf32>
    %cst_17 = arith.constant 0.000000e+00 : f32
    %28 = arith.subf %cst_17, %15 : f32
    %29 = vector.broadcast %28 : f32 to vector<8x128xf32>
    %30 = arith.maximumf %29, %27 : vector<8x128xf32>
    %31 = vector.broadcast %15 : f32 to vector<8x128xf32>
    %32 = arith.minimumf %31, %30 : vector<8x128xf32>
    %33 = arith.subf %27, %32 : vector<8x128xf32>
    %34 = arith.truncf %33 : vector<8x128xf32> to vector<8x128xbf16>
    %cst_18 = arith.constant dense<0.000000e+00> : vector<8x128xf32>
    %35 = tpu.matmul %34, %2, %cst_18 {dimension_numbers = #tpu.dot_dimension_numbers<[1], [0], [0], [1], [0, 0, 1, 1], [], []>} : vector<8x128xbf16>, vector<128x128xbf16>, vector<8x128xf32> -> vector<8x128xf32>
    %36 = arith.subf %3, %35 : vector<8x128xf32>
    %37 = vector.broadcast %5 : f32 to vector<8x128xf32>
    %38 = arith.mulf %37, %36 : vector<8x128xf32>
    %39 = arith.addf %33, %38 : vector<8x128xf32>
    %cst_19 = arith.constant 0.000000e+00 : f32
    %40 = arith.subf %cst_19, %16 : f32
    %41 = vector.broadcast %40 : f32 to vector<8x128xf32>
    %42 = arith.maximumf %41, %39 : vector<8x128xf32>
    %43 = vector.broadcast %16 : f32 to vector<8x128xf32>
    %44 = arith.minimumf %43, %42 : vector<8x128xf32>
    %45 = arith.subf %39, %44 : vector<8x128xf32>
    %46 = arith.truncf %45 : vector<8x128xf32> to vector<8x128xbf16>
    %cst_20 = arith.constant dense<0.000000e+00> : vector<8x128xf32>
    %47 = tpu.matmul %46, %2, %cst_20 {dimension_numbers = #tpu.dot_dimension_numbers<[1], [0], [0], [1], [0, 0, 1, 1], [], []>} : vector<8x128xbf16>, vector<128x128xbf16>, vector<8x128xf32> -> vector<8x128xf32>
    %48 = arith.subf %3, %47 : vector<8x128xf32>
    %49 = vector.broadcast %6 : f32 to vector<8x128xf32>
    %50 = arith.mulf %49, %48 : vector<8x128xf32>
    %51 = arith.addf %45, %50 : vector<8x128xf32>
    %cst_21 = arith.constant 0.000000e+00 : f32
    %52 = arith.subf %cst_21, %17 : f32
    %53 = vector.broadcast %52 : f32 to vector<8x128xf32>
    %54 = arith.maximumf %53, %51 : vector<8x128xf32>
    %55 = vector.broadcast %17 : f32 to vector<8x128xf32>
    %56 = arith.minimumf %55, %54 : vector<8x128xf32>
    %57 = arith.subf %51, %56 : vector<8x128xf32>
    %58 = arith.truncf %57 : vector<8x128xf32> to vector<8x128xbf16>
    %cst_22 = arith.constant dense<0.000000e+00> : vector<8x128xf32>
    %59 = tpu.matmul %58, %2, %cst_22 {dimension_numbers = #tpu.dot_dimension_numbers<[1], [0], [0], [1], [0, 0, 1, 1], [], []>} : vector<8x128xbf16>, vector<128x128xbf16>, vector<8x128xf32> -> vector<8x128xf32>
    %60 = arith.subf %3, %59 : vector<8x128xf32>
    %61 = vector.broadcast %7 : f32 to vector<8x128xf32>
    %62 = arith.mulf %61, %60 : vector<8x128xf32>
    %63 = arith.addf %57, %62 : vector<8x128xf32>
    %cst_23 = arith.constant 0.000000e+00 : f32
    %64 = arith.subf %cst_23, %18 : f32
    %65 = vector.broadcast %64 : f32 to vector<8x128xf32>
    %66 = arith.maximumf %65, %63 : vector<8x128xf32>
    %67 = vector.broadcast %18 : f32 to vector<8x128xf32>
    %68 = arith.minimumf %67, %66 : vector<8x128xf32>
    %69 = arith.subf %63, %68 : vector<8x128xf32>
    %70 = arith.truncf %69 : vector<8x128xf32> to vector<8x128xbf16>
    %cst_24 = arith.constant dense<0.000000e+00> : vector<8x128xf32>
    %71 = tpu.matmul %70, %2, %cst_24 {dimension_numbers = #tpu.dot_dimension_numbers<[1], [0], [0], [1], [0, 0, 1, 1], [], []>} : vector<8x128xbf16>, vector<128x128xbf16>, vector<8x128xf32> -> vector<8x128xf32>
    %72 = arith.subf %3, %71 : vector<8x128xf32>
    %73 = vector.broadcast %8 : f32 to vector<8x128xf32>
    %74 = arith.mulf %73, %72 : vector<8x128xf32>
    %75 = arith.addf %69, %74 : vector<8x128xf32>
    %cst_25 = arith.constant 0.000000e+00 : f32
    %76 = arith.subf %cst_25, %19 : f32
    %77 = vector.broadcast %76 : f32 to vector<8x128xf32>
    %78 = arith.maximumf %77, %75 : vector<8x128xf32>
    %79 = vector.broadcast %19 : f32 to vector<8x128xf32>
    %80 = arith.minimumf %79, %78 : vector<8x128xf32>
    %81 = arith.subf %75, %80 : vector<8x128xf32>
    %82 = arith.truncf %81 : vector<8x128xf32> to vector<8x128xbf16>
    %cst_26 = arith.constant dense<0.000000e+00> : vector<8x128xf32>
    %83 = tpu.matmul %82, %2, %cst_26 {dimension_numbers = #tpu.dot_dimension_numbers<[1], [0], [0], [1], [0, 0, 1, 1], [], []>} : vector<8x128xbf16>, vector<128x128xbf16>, vector<8x128xf32> -> vector<8x128xf32>
    %84 = arith.subf %3, %83 : vector<8x128xf32>
    %85 = vector.broadcast %9 : f32 to vector<8x128xf32>
    %86 = arith.mulf %85, %84 : vector<8x128xf32>
    %87 = arith.addf %81, %86 : vector<8x128xf32>
    %cst_27 = arith.constant 0.000000e+00 : f32
    %88 = arith.subf %cst_27, %20 : f32
    %89 = vector.broadcast %88 : f32 to vector<8x128xf32>
    %90 = arith.maximumf %89, %87 : vector<8x128xf32>
    %91 = vector.broadcast %20 : f32 to vector<8x128xf32>
    %92 = arith.minimumf %91, %90 : vector<8x128xf32>
    %93 = arith.subf %87, %92 : vector<8x128xf32>
    %94 = arith.truncf %93 : vector<8x128xf32> to vector<8x128xbf16>
    %cst_28 = arith.constant dense<0.000000e+00> : vector<8x128xf32>
    %95 = tpu.matmul %94, %2, %cst_28 {dimension_numbers = #tpu.dot_dimension_numbers<[1], [0], [0], [1], [0, 0, 1, 1], [], []>} : vector<8x128xbf16>, vector<128x128xbf16>, vector<8x128xf32> -> vector<8x128xf32>
    %96 = arith.subf %3, %95 : vector<8x128xf32>
    %97 = vector.broadcast %10 : f32 to vector<8x128xf32>
    %98 = arith.mulf %97, %96 : vector<8x128xf32>
    %99 = arith.addf %93, %98 : vector<8x128xf32>
    %cst_29 = arith.constant 0.000000e+00 : f32
    %100 = arith.subf %cst_29, %21 : f32
    %101 = vector.broadcast %100 : f32 to vector<8x128xf32>
    %102 = arith.maximumf %101, %99 : vector<8x128xf32>
    %103 = vector.broadcast %21 : f32 to vector<8x128xf32>
    %104 = arith.minimumf %103, %102 : vector<8x128xf32>
    %105 = arith.subf %99, %104 : vector<8x128xf32>
    %106 = arith.truncf %105 : vector<8x128xf32> to vector<8x128xbf16>
    %cst_30 = arith.constant dense<0.000000e+00> : vector<8x128xf32>
    %107 = tpu.matmul %106, %2, %cst_30 {dimension_numbers = #tpu.dot_dimension_numbers<[1], [0], [0], [1], [0, 0, 1, 1], [], []>} : vector<8x128xbf16>, vector<128x128xbf16>, vector<8x128xf32> -> vector<8x128xf32>
    %108 = arith.subf %3, %107 : vector<8x128xf32>
    %109 = vector.broadcast %11 : f32 to vector<8x128xf32>
    %110 = arith.mulf %109, %108 : vector<8x128xf32>
    %111 = arith.addf %105, %110 : vector<8x128xf32>
    %cst_31 = arith.constant 0.000000e+00 : f32
    %112 = arith.subf %cst_31, %22 : f32
    %113 = vector.broadcast %112 : f32 to vector<8x128xf32>
    %114 = arith.maximumf %113, %111 : vector<8x128xf32>
    %115 = vector.broadcast %22 : f32 to vector<8x128xf32>
    %116 = arith.minimumf %115, %114 : vector<8x128xf32>
    %117 = arith.subf %111, %116 : vector<8x128xf32>
    %118 = arith.truncf %117 : vector<8x128xf32> to vector<8x128xbf16>
    %cst_32 = arith.constant dense<0.000000e+00> : vector<8x128xf32>
    %119 = tpu.matmul %118, %2, %cst_32 {dimension_numbers = #tpu.dot_dimension_numbers<[1], [0], [0], [1], [0, 0, 1, 1], [], []>} : vector<8x128xbf16>, vector<128x128xbf16>, vector<8x128xf32> -> vector<8x128xf32>
    %120 = arith.subf %3, %119 : vector<8x128xf32>
    %121 = vector.broadcast %12 : f32 to vector<8x128xf32>
    %122 = arith.mulf %121, %120 : vector<8x128xf32>
    %123 = arith.addf %117, %122 : vector<8x128xf32>
    %cst_33 = arith.constant 0.000000e+00 : f32
    %124 = arith.subf %cst_33, %23 : f32
    %125 = vector.broadcast %124 : f32 to vector<8x128xf32>
    %126 = arith.maximumf %125, %123 : vector<8x128xf32>
    %127 = vector.broadcast %23 : f32 to vector<8x128xf32>
    %128 = arith.minimumf %127, %126 : vector<8x128xf32>
    %129 = arith.subf %123, %128 : vector<8x128xf32>
    %130 = arith.truncf %129 : vector<8x128xf32> to vector<8x128xbf16>
    %cst_34 = arith.constant dense<0.000000e+00> : vector<8x128xf32>
    %131 = tpu.matmul %130, %2, %cst_34 {dimension_numbers = #tpu.dot_dimension_numbers<[1], [0], [0], [1], [0, 0, 1, 1], [], []>} : vector<8x128xbf16>, vector<128x128xbf16>, vector<8x128xf32> -> vector<8x128xf32>
    %132 = arith.subf %3, %131 : vector<8x128xf32>
    %133 = vector.broadcast %13 : f32 to vector<8x128xf32>
    %134 = arith.mulf %133, %132 : vector<8x128xf32>
    %135 = arith.addf %129, %134 : vector<8x128xf32>
    %cst_35 = arith.constant 0.000000e+00 : f32
    %136 = arith.subf %cst_35, %24 : f32
    %137 = vector.broadcast %136 : f32 to vector<8x128xf32>
    %138 = arith.maximumf %137, %135 : vector<8x128xf32>
    %139 = vector.broadcast %24 : f32 to vector<8x128xf32>
    %140 = arith.minimumf %139, %138 : vector<8x128xf32>
    %141 = arith.subf %135, %140 : vector<8x128xf32>
    %142 = arith.truncf %141 : vector<8x128xf32> to vector<8x128xbf16>
    %cst_36 = arith.constant dense<0.000000e+00> : vector<8x128xf32>
    %143 = tpu.matmul %142, %2, %cst_36 {dimension_numbers = #tpu.dot_dimension_numbers<[1], [0], [0], [1], [0, 0, 1, 1], [], []>} : vector<8x128xbf16>, vector<128x128xbf16>, vector<8x128xf32> -> vector<8x128xf32>
    %144 = arith.subf %3, %143 : vector<8x128xf32>
    %145 = vector.broadcast %14 : f32 to vector<8x128xf32>
    %146 = arith.mulf %145, %144 : vector<8x128xf32>
    %147 = arith.addf %141, %146 : vector<8x128xf32>
    %cst_37 = arith.constant 0.000000e+00 : f32
    %148 = arith.subf %cst_37, %25 : f32
    %149 = vector.broadcast %148 : f32 to vector<8x128xf32>
    %150 = arith.maximumf %149, %147 : vector<8x128xf32>
    %151 = vector.broadcast %25 : f32 to vector<8x128xf32>
    %152 = arith.minimumf %151, %150 : vector<8x128xf32>
    %153 = arith.subf %147, %152 : vector<8x128xf32>
    %c0_38 = arith.constant 0 : index
    %c0_39 = arith.constant 0 : index
    %154 = vector.load %arg6[%c0_38, %c0_39] : memref<8x128xf32, #tpu.memory_space<vmem>>, vector<8x128xf32>
    tpu.vector_store %arg6[%c0_38, %c0_39], %153 {strides = array<i32>} : memref<8x128xf32, #tpu.memory_space<vmem>>, vector<8x128xf32>,
    return
  }
  func.func @transform_0(%arg0: i32, %arg1: memref<11xf32, #tpu.memory_space<smem>>, %arg2: memref<11xf32, #tpu.memory_space<smem>>) -> (i32, i32) {
    %c0_i32 = arith.constant 0 : i32
    %c0_i32_0 = arith.constant 0 : i32
    return %arg0, %c0_i32 : i32, i32
  }
  func.func @transform_1(%arg0: i32, %arg1: memref<11xf32, #tpu.memory_space<smem>>, %arg2: memref<11xf32, #tpu.memory_space<smem>>) -> (i32, i32) {
    %c0_i32 = arith.constant 0 : i32
    %c0_i32_0 = arith.constant 0 : i32
    %c0_i32_1 = arith.constant 0 : i32
    return %c0_i32, %c0_i32_0 : i32, i32
  }
  func.func @transform_2(%arg0: i32, %arg1: memref<11xf32, #tpu.memory_space<smem>>, %arg2: memref<11xf32, #tpu.memory_space<smem>>) -> (i32, i32) {
    %c0_i32 = arith.constant 0 : i32
    %c0_i32_0 = arith.constant 0 : i32
    %c0_i32_1 = arith.constant 0 : i32
    return %c0_i32, %c0_i32_0 : i32, i32
  }
  func.func @transform_3(%arg0: i32, %arg1: memref<11xf32, #tpu.memory_space<smem>>, %arg2: memref<11xf32, #tpu.memory_space<smem>>) -> (i32, i32) {
    %c0_i32 = arith.constant 0 : i32
    %c0_i32_0 = arith.constant 0 : i32
    return %arg0, %c0_i32 : i32, i32
  }
}

</mosaic_0001>

<llo_original>
// kernel: tpu_custom_call.1
$region0: #{tpu_custom_call.1}
  #allocation0 [shape = 'u32[]', space=smem, size = 0x4, offset = 0x4, fixed_abs, tag = 'smem constant byte address 0x4 - core index']
  #allocation1 [shape = 'u32[144,128]{1,0:T(1,128)}', space=vmem, size = 0x12000, scoped, tag = 'internal scratch']
  #allocation2 [shape = 's32[1]{0}', space=sflag, size = 0x4, scoped, tag = 'scoped memory for tpu_custom_call.1']
  #allocation3 [shape = 'u8[512]{0}', space=smem, size = 0x200, scoped, tag = 'prefetched SMEM operand 0']
  #allocation4 [shape = 'u8[512]{0}', space=smem, size = 0x200, scoped, tag = 'prefetched SMEM operand 1']
  %s0 = inlined_call_operand.hbm [shape: f32[11], index: 0, kind: input, shape index: {}]
  %s1 = inlined_call_operand.vmem [shape: f32[11], index: 1, kind: input, shape index: {}]
  %s2 = inlined_call_operand.hbm [shape: bf16[16,128], index: 2, kind: input, shape index: {}]
  %s3 = inlined_call_operand.hbm [shape: bf16[128,128], index: 3, kind: input, shape index: {}]
  %s4 = inlined_call_operand.hbm [shape: bf16[128,128], index: 4, kind: input, shape index: {}]
  %s5 = inlined_call_operand.hbm [shape: f32[16,128], index: 5, kind: output, shape index: {}]
  %s6 = sld [smem:[#allocation0]]
  $region57: #{tpu_custom_call.1} parent=0
    _
  %s8 = ssub.s32 1, %s6
  %s9 = scalar_select 0, %s8, %s6
  %11 = dma.hbm_to_smem %s0, 16, [#allocation3], [#allocation2]
  %s12 = sshll.u32 %s1, 4
  %s13 = int_to_ptr.vmem [resolvable:$true] %s12
  %15 = dma.vmem_to_smem %s13, 16, [#allocation4], [#allocation2]
  %16 = dma.done [#allocation2], 32
  %17 = sfence
  $region1: #{tpu_custom_call.1} parent=0
    #allocation5 [shape = 'u8[4096]{0}', space=vmem, size = 0x1000, scoped, tag = 'input window, operand 2']
    #allocation6 [shape = 's32[2]{0}', space=sflag, size = 0x8, scoped, tag = 'scoped memory for tpu_custom_call.1']
    #allocation7 [shape = 's32[2]{0}', space=sflag, size = 0x8, scoped, tag = 'scoped memory for tpu_custom_call.1']
    #allocation8 [shape = 'u8[32768]{0}', space=vmem, size = 0x8000, scoped, tag = 'input window, operand 3, single buffered']
    #allocation9 [shape = 's32[1]{0}', space=sflag, size = 0x4, scoped, tag = 'scoped memory for tpu_custom_call.1']
    #allocation10 [shape = 'u8[32768]{0}', space=vmem, size = 0x8000, scoped, tag = 'input window, operand 4, single buffered']
    #allocation11 [shape = 'u8[8192]{0}', space=vmem, size = 0x2000, scoped, tag = 'output window, operand 0']
    %18 = vsyncpa [#allocation6], 0
    %s19 = scalar_lea.sflag [#allocation6], 1
    %20 = vsyncpa %s19, 0
    %21 = vsyncpa [#allocation9], 0
    %22 = vsyncpa [#allocation7], 0
    %s23 = scalar_lea.sflag [#allocation7], 1
    %24 = vsyncpa %s23, 0
    loop: start=0, step=1, limit=4
    $region2: #{tpu_custom_call.1} parent=1 // loop_pre_header
      _
    $region3: #{tpu_custom_call.1} parent=1 // loop_header
      %s26 = sphi 0, %s30
      %p27 = scmp.ge.s32.totalorder %s26, 4
      %s36 = sphi 0, %s38
      %s39 = sphi 0, %s36
      %s40 = sphi 0, %s39
      %s56 = sphi 0, %s40
      %s60 = sphi 0, %s60
      %s62 = sphi 0, %s60
      %s63 = sphi 0, %s62
      %s77 = sphi 0, %s63
      %s81 = sphi 0, %s81
      %s83 = sphi 0, %s81
      %s84 = sphi 0, %s83
      %s98 = sphi 0, %s84
      %s104 = sphi 0, %s106
      %s107 = sphi 0, %s104
      %s108 = sphi 0, %s107
      %s124 = sphi 0, %s108
    $region4: #{tpu_custom_call.1} parent=1 // loop_header_branch
      %29 = sbr.rel (%p27) target = $region8
    $region5: #{tpu_custom_call.1} parent=1 // loop_body
      %s31 = ssub.s32 %s26, 1
      %s32 = ssub.s32 %s26, 2
      %s33 = sadd.s32 %s26, 1
      %s34 = ssub.s32 %s26, %s33
      %p35 = scmp.eq.s32.totalorder %s34, 0
      %s37 = sadd.s32 %s36, 1
      %s38 = scalar_select %p35, %s36, %s37
      %p41 = pneg %p35
      %p42 = scmp.eq.s32.totalorder %s26, 1
      %p43 = por %p41, %p42
      %p44 = scmp.ne.s32.totalorder %s36, %s39
      %p45 = scmp.eq.s32.totalorder %s26, 0
      %p46 = por %p44, %p45
      %p47 = scmp.ne.s32.totalorder %s36, %s39
      %p48 = scmp.eq.s32.totalorder %s31, 1
      %p49 = por %p47, %p48
      %p50 = scmp.ne.s32.totalorder %s39, %s40
      %p51 = scmp.eq.s32.totalorder %s31, 0
      %p52 = por %p50, %p51
      %p53 = scmp.ne.s32.totalorder %s39, %s40
      %p54 = scmp.eq.s32.totalorder %s32, 1
      %p55 = por %p53, %p54
      %p57 = scmp.ne.s32.totalorder %s40, %s56
      %p58 = scmp.eq.s32.totalorder %s32, 0
      %p59 = por %p57, %p58
      %s61 = sadd.s32 %s60, 1
      %p64 = scmp.eq.s32.totalorder %s26, 1
      %p65 = scmp.ne.s32.totalorder %s60, %s62
      %p66 = scmp.eq.s32.totalorder %s26, 0
      %p67 = por %p65, %p66
      %p68 = scmp.ne.s32.totalorder %s60, %s62
      %p69 = scmp.eq.s32.totalorder %s31, 1
      %p70 = por %p68, %p69
      %p71 = scmp.ne.s32.totalorder %s62, %s63
      %p72 = scmp.eq.s32.totalorder %s31, 0
      %p73 = por %p71, %p72
      %p74 = scmp.ne.s32.totalorder %s62, %s63
      %p75 = scmp.eq.s32.totalorder %s32, 1
      %p76 = por %p74, %p75
      %p78 = scmp.ne.s32.totalorder %s63, %s77
      %p79 = scmp.eq.s32.totalorder %s32, 0
      %p80 = por %p78, %p79
      %s82 = sadd.s32 %s81, 1
      %p85 = scmp.eq.s32.totalorder %s26, 1
      %p86 = scmp.ne.s32.totalorder %s81, %s83
      %p87 = scmp.eq.s32.totalorder %s26, 0
      %p88 = por %p86, %p87
      %p89 = scmp.ne.s32.totalorder %s81, %s83
      %p90 = scmp.eq.s32.totalorder %s31, 1
      %p91 = por %p89, %p90
      %p92 = scmp.ne.s32.totalorder %s83, %s84
      %p93 = scmp.eq.s32.totalorder %s31, 0
      %p94 = por %p92, %p93
      %p95 = scmp.ne.s32.totalorder %s83, %s84
      %p96 = scmp.eq.s32.totalorder %s32, 1
      %p97 = por %p95, %p96
      %p99 = scmp.ne.s32.totalorder %s84, %s98
      %p100 = scmp.eq.s32.totalorder %s32, 0
      %p101 = por %p99, %p100
      %s102 = ssub.s32 %s26, %s33
      %p103 = scmp.eq.s32.totalorder %s102, 0
      %s105 = sadd.s32 %s104, 1
      %s106 = scalar_select %p103, %s104, %s105
      %p109 = pneg %p103
      %p110 = scmp.eq.s32.totalorder %s26, 1
      %p111 = por %p109, %p110
      %p112 = scmp.ne.s32.totalorder %s104, %s107
      %p113 = scmp.eq.s32.totalorder %s26, 0
      %p114 = por %p112, %p113
      %p115 = scmp.ne.s32.totalorder %s104, %s107
      %p116 = scmp.eq.s32.totalorder %s31, 1
      %p117 = por %p115, %p116
      %p118 = scmp.ne.s32.totalorder %s107, %s108
      %p119 = scmp.eq.s32.totalorder %s31, 0
      %p120 = por %p118, %p119
      %p121 = scmp.ne.s32.totalorder %s107, %s108
      %p122 = scmp.eq.s32.totalorder %s32, 1
      %p123 = por %p121, %p122
      %p125 = scmp.ne.s32.totalorder %s108, %s124
      %p126 = scmp.eq.s32.totalorder %s32, 0
      %p127 = por %p125, %p126
      %p128 = scmp.le.s32.totalorder 1, %s26
      %p129 = scmp.lt.s32.totalorder %s26, 3
      %p130 = pnand %p128, %p129
      %p131 = pneg %p130
      // Predicated region
      $region9: #{tpu_custom_call.1} parent=5 // pred_check
        _
      $region10: #{tpu_custom_call.1} parent=5 // pred_check_branch
        %133 = sbr.rel (%p130) target = $region12
      $region11: #{tpu_custom_call.1} parent=5 // pred_region
        %s134 = ssub.s32 %s26, 1
        // Predicated region
        $region13: #{tpu_custom_call.1} parent=11 // pred_check
          %p135 = pneg %p73
        $region14: #{tpu_custom_call.1} parent=11 // pred_check_branch
          %137 = sbr.rel (%p135) target = $region16
        $region15: #{tpu_custom_call.1} parent=11 // pred_region
          %s139 = ssub.s32 1024, 1024
          %140 = vsyncadd [#allocation9], %s139
          %s141 = sshll.u32 [#allocation8], 4
          %s142 = int_to_ptr.vmem [resolvable:$true] %s141
          %147 = dma.hbm_to_vmem [thread:$0]  %s3, 1024, %s142, [#allocation9], 64, 64, 4
        $region16: #{tpu_custom_call.1} parent=11 // pred_fallthru
          _
        // Predicated region
        $region17: #{tpu_custom_call.1} parent=11 // pred_check
          %p148 = pneg %p94
        $region18: #{tpu_custom_call.1} parent=11 // pred_check_branch
          %150 = sbr.rel (%p148) target = $region20
        $region19: #{tpu_custom_call.1} parent=11 // pred_region
          %s152 = ssub.s32 1024, 1024
          %153 = vsyncadd [#allocation9], %s152
          %s154 = sshll.u32 [#allocation10], 4
          %s155 = int_to_ptr.vmem [resolvable:$true] %s154
          %160 = dma.hbm_to_vmem [thread:$0]  %s4, 1024, %s155, [#allocation9], 64, 64, 4
        $region20: #{tpu_custom_call.1} parent=11 // pred_fallthru
          _
      $region12: #{tpu_custom_call.1} parent=5 // pred_fallthru
        _
      %p161 = scmp.lt.s32.totalorder %s26, 2
      // Predicated region
      $region21: #{tpu_custom_call.1} parent=5 // pred_check
        %p162 = pneg %p161
      $region22: #{tpu_custom_call.1} parent=5 // pred_check_branch
        %164 = sbr.rel (%p162) target = $region24
      $region23: #{tpu_custom_call.1} parent=5 // pred_region
        // Predicated region
        $region25: #{tpu_custom_call.1} parent=23 // pred_check
          %p165 = pneg %p46
        $region26: #{tpu_custom_call.1} parent=23 // pred_check_branch
          %167 = sbr.rel (%p165) target = $region28
        $region27: #{tpu_custom_call.1} parent=23 // pred_region
          %s168 = sand.u32 %s36, 1
          %s169 = scalar_lea.sflag [#allocation6], %s168
          %s170 = sand.u32 %s36, 1
          %s171 = smul.addr %s170, 4
          %s172 = scalar_lea.vmem [#allocation5], %s171
          %s174 = ssub.s32 64, 64
          %175 = vsyncadd %s169, %s174
          %s176 = smul.addr %s26, 64
          %s177 = scalar_lea.hbm %s2, %s176
          %s179 = sshll.u32 %s172, 4
          %s180 = int_to_ptr.vmem [resolvable:$true] %s179
          %182 = dma.hbm_to_vmem [thread:$0]  %s177, 64, %s180, %s169
        $region28: #{tpu_custom_call.1} parent=23 // pred_fallthru
          _
      $region24: #{tpu_custom_call.1} parent=5 // pred_fallthru
        _
      %p183 = scmp.le.s32.totalorder 1, %s26
      %p184 = scmp.lt.s32.totalorder %s26, 3
      %p185 = pnand %p183, %p184
      %p186 = pneg %p185
      // Predicated region
      $region29: #{tpu_custom_call.1} parent=5 // pred_check
        _
      $region30: #{tpu_custom_call.1} parent=5 // pred_check_branch
        %188 = sbr.rel (%p185) target = $region32
      $region31: #{tpu_custom_call.1} parent=5 // pred_region
        %s189 = ssub.s32 %s26, 1
        %s190 = sand.u32 %s39, 1
        %s191 = scalar_lea.sflag [#allocation6], %s190
        %s192 = sand.u32 %s39, 1
        %s193 = smul.addr %s192, 4
        %s194 = scalar_lea.vmem [#allocation5], %s193
        // Predicated region
        $region33: #{tpu_custom_call.1} parent=31 // pred_check
          %p195 = pneg %p52
        $region34: #{tpu_custom_call.1} parent=31 // pred_check_branch
          %197 = sbr.rel (%p195) target = $region36
        $region35: #{tpu_custom_call.1} parent=31 // pred_region
          %198 = dma.done %s191, 64
        $region36: #{tpu_custom_call.1} parent=31 // pred_fallthru
          _
        // Predicated region
        $region37: #{tpu_custom_call.1} parent=31 // pred_check
          %p199 = pneg %p73
        $region38: #{tpu_custom_call.1} parent=31 // pred_check_branch
          %201 = sbr.rel (%p199) target = $region40
        $region39: #{tpu_custom_call.1} parent=31 // pred_region
          %202 = dma.done [#allocation9], 1024
        $region40: #{tpu_custom_call.1} parent=31 // pred_fallthru
          _
        // Predicated region
        $region41: #{tpu_custom_call.1} parent=31 // pred_check
          %p203 = pneg %p94
        $region42: #{tpu_custom_call.1} parent=31 // pred_check_branch
          %205 = sbr.rel (%p203) target = $region44
        $region43: #{tpu_custom_call.1} parent=31 // pred_region
          %206 = dma.done [#allocation9], 1024
        $region44: #{tpu_custom_call.1} parent=31 // pred_fallthru
          _
        %s207 = sand.u32 %s39, 1
        %s208 = scalar_lea.sflag [#allocation6], %s207
        %s209 = sand.u32 %s39, 1
        %s210 = smul.addr %s209, 4
        %s211 = scalar_lea.vmem [#allocation5], %s210
        %p212 = pneg %p52
        %p213 = pneg %p49
        %p214 = pneg %p73
        %p215 = pneg %p70
        %p216 = pneg %p94
        %p217 = pneg %p91
        %p218 = pneg %p120
        %p219 = pneg %p117
        %s220 = sand.u32 %s107, 1
        %s221 = scalar_lea.sflag [#allocation7], %s220
        %s222 = sand.u32 %s107, 1
        %s223 = smul.addr %s222, 8
        %s224 = scalar_lea.vmem [#allocation11], %s223
        %v226 = vld [vmem:[%s194] sm:$0xf]
        %v227 = vld [vmem:[#allocation8] sm:$0xf]
        %v228 = vld [vmem:[#allocation8 + $0x4] sm:$0xf]
        %v229 = vld [vmem:[#allocation8 + $0x8] sm:$0xf]
        %v230 = vld [vmem:[#allocation8 + $0xc] sm:$0xf]
        %v231 = vld [vmem:[#allocation8 + $0x10] sm:$0xf]
        %v232 = vld [vmem:[#allocation8 + $0x14] sm:$0xf]
        %v233 = vld [vmem:[#allocation8 + $0x18] sm:$0xf]
        %v234 = vld [vmem:[#allocation8 + $0x1c] sm:$0xf]
        %v235 = vld [vmem:[#allocation8 + $0x20] sm:$0xf]
        %v236 = vld [vmem:[#allocation8 + $0x24] sm:$0xf]
        %v237 = vld [vmem:[#allocation8 + $0x28] sm:$0xf]
        %v238 = vld [vmem:[#allocation8 + $0x2c] sm:$0xf]
        %v239 = vld [vmem:[#allocation8 + $0x30] sm:$0xf]
        %v240 = vld [vmem:[#allocation8 + $0x34] sm:$0xf]
        %v241 = vld [vmem:[#allocation8 + $0x38] sm:$0xf]
        %v242 = vld [vmem:[#allocation8 + $0x3c] sm:$0xf]
        %v243 = vld [vmem:[#allocation10] sm:$0xf]
        %v244 = vld [vmem:[#allocation10 + $0x4] sm:$0xf]
        %v245 = vld [vmem:[#allocation10 + $0x8] sm:$0xf]
        %v246 = vld [vmem:[#allocation10 + $0xc] sm:$0xf]
        %v247 = vld [vmem:[#allocation10 + $0x10] sm:$0xf]
        %v248 = vld [vmem:[#allocation10 + $0x14] sm:$0xf]
        %v249 = vld [vmem:[#allocation10 + $0x18] sm:$0xf]
        %v250 = vld [vmem:[#allocation10 + $0x1c] sm:$0xf]
        %v251 = vld [vmem:[#allocation10 + $0x20] sm:$0xf]
        %v252 = vld [vmem:[#allocation10 + $0x24] sm:$0xf]
        %v253 = vld [vmem:[#allocation10 + $0x28] sm:$0xf]
        %v254 = vld [vmem:[#allocation10 + $0x2c] sm:$0xf]
        %v255 = vld [vmem:[#allocation10 + $0x30] sm:$0xf]
        %v256 = vld [vmem:[#allocation10 + $0x34] sm:$0xf]
        %v257 = vld [vmem:[#allocation10 + $0x38] sm:$0xf]
        %v258 = vld [vmem:[#allocation10 + $0x3c] sm:$0xf]
        %v275 = vunpack.c.l.b16 %v227
        %v276 = vunpack.c.l.b16 %v228
        %v277 = vunpack.c.l.b16 %v229
        %v278 = vunpack.c.l.b16 %v230
        %v279 = vunpack.c.l.b16 %v231
        %v280 = vunpack.c.l.b16 %v232
        %v281 = vunpack.c.l.b16 %v233
        %v282 = vunpack.c.l.b16 %v234
        %v283 = vunpack.c.l.b16 %v235
        %v284 = vunpack.c.l.b16 %v236
        %v285 = vunpack.c.l.b16 %v237
        %v286 = vunpack.c.l.b16 %v238
        %v287 = vunpack.c.l.b16 %v239
        %v288 = vunpack.c.l.b16 %v240
        %v289 = vunpack.c.l.b16 %v241
        %v290 = vunpack.c.l.b16 %v242
        %v291 = vpack.c.b16 %v276, %v275
        %v292 = vpack.c.b16 %v278, %v277
        %v293 = vpack.c.b16 %v280, %v279
        %v294 = vpack.c.b16 %v282, %v281
        %v295 = vpack.c.b16 %v284, %v283
        %v296 = vpack.c.b16 %v286, %v285
        %v297 = vpack.c.b16 %v288, %v287
        %v298 = vpack.c.b16 %v290, %v289
        %307 = vmatprep.subr.bf16.mxu0 0
        %308 = vmatpush1.bf16.msra.mxu0 %v291
        %309 = vmatprep.subr.bf16.mxu0 0
        %310 = vmatpush1.bf16.msra.mxu0 %v292
        %311 = vmatprep.subr.bf16.mxu0 0
        %312 = vmatpush1.bf16.msra.mxu0 %v293
        %313 = vmatprep.subr.bf16.mxu0 0
        %314 = vmatpush1.bf16.msra.mxu0 %v294
        %315 = vmatprep.subr.bf16.mxu0 0
        %316 = vmatpush1.bf16.msra.mxu0 %v295
        %317 = vmatprep.subr.bf16.mxu0 0
        %318 = vmatpush1.bf16.msra.mxu0 %v296
        %319 = vmatprep.subr.bf16.mxu0 0
        %320 = vmatpush1.bf16.msra.mxu0 %v297
        %321 = vmatprep.subr.bf16.mxu0 0
        %322 = vmatpush1.bf16.msra.mxu0 %v298
        %323 = vmatprep.subr.bf16.mxu0 0
        %324 = vmatpush1.bf16.msra.mxu0 0
        %325 = vmatprep.subr.bf16.mxu0 0
        %326 = vmatpush1.bf16.msra.mxu0 0
        %327 = vmatprep.subr.bf16.mxu0 0
        %328 = vmatpush1.bf16.msra.mxu0 0
        %329 = vmatprep.subr.bf16.mxu0 0
        %330 = vmatpush1.bf16.msra.mxu0 0
        %331 = vmatprep.subr.bf16.mxu0 0
        %332 = vmatpush1.bf16.msra.mxu0 0
        %333 = vmatprep.subr.bf16.mxu0 0
        %334 = vmatpush1.bf16.msra.mxu0 0
        %335 = vmatprep.subr.bf16.mxu0 0
        %336 = vmatpush1.bf16.msra.mxu0 0
        %337 = vmatprep.subr.bf16.mxu0 0
        %338 = vmatpush1.bf16.msra.mxu0 0
        %339 = vmatprep.mubr.bf16.mxu0 0
        %340 = vmatmul.mubr.bf16.gmra.mrb[0].mxu0 %v226
        %v341 = vpop.f32.mrb[0].mxu0
        %v342 = vadd.f32 0.0, %v341
        %v343 = vpop.f32.mrb[0].mxu0
        %v344 = vpop.f32.mrb[0].mxu0
        %v345 = vpop.f32.mrb[0].mxu0
        %346 = vdwg.mxu0
        %s347 = sld [smem:[#allocation3]]
        %s348 = sld [smem:[#allocation3 + $0x1]]
        %s349 = sld [smem:[#allocation3 + $0x2]]
        %s350 = sld [smem:[#allocation3 + $0x3]]
        %s351 = sld [smem:[#allocation3 + $0x4]]
        %s352 = sld [smem:[#allocation3 + $0x5]]
        %s353 = sld [smem:[#allocation3 + $0x6]]
        %s354 = sld [smem:[#allocation3 + $0x7]]
        %s355 = sld [smem:[#allocation3 + $0x8]]
        %s356 = sld [smem:[#allocation3 + $0x9]]
        %s357 = sld [smem:[#allocation3 + $0xa]]
        %s358 = sld [smem:[#allocation4]]
        %s359 = sld [smem:[#allocation4 + $0x1]]
        %s360 = sld [smem:[#allocation4 + $0x2]]
        %s361 = sld [smem:[#allocation4 + $0x3]]
        %s362 = sld [smem:[#allocation4 + $0x4]]
        %s363 = sld [smem:[#allocation4 + $0x5]]
        %s364 = sld [smem:[#allocation4 + $0x6]]
        %s365 = sld [smem:[#allocation4 + $0x7]]
        %s366 = sld [smem:[#allocation4 + $0x8]]
        %s367 = sld [smem:[#allocation4 + $0x9]]
        %s368 = sld [smem:[#allocation4 + $0xa]]
        %v369 = vstv %s347
        %v370 = vmul.f32 %v369, %v342
        %s371 = ssub.f32 0.0, %s358
        %v372 = vstv %s371
        %v373 = vmax.f32 %v372, %v370
        %v374 = vstv %s358
        %v375 = vmin.f32 %v374, %v373
        %v376 = vsub.f32 %v370, %v375
        %v377 = vpack.c.bf16 %v376, %v376
        %v394 = vunpack.c.l.b16 %v243
        %v395 = vunpack.c.l.b16 %v244
        %v396 = vunpack.c.l.b16 %v245
        %v397 = vunpack.c.l.b16 %v246
        %v398 = vunpack.c.l.b16 %v247
        %v399 = vunpack.c.l.b16 %v248
        %v400 = vunpack.c.l.b16 %v249
        %v401 = vunpack.c.l.b16 %v250
        %v402 = vunpack.c.l.b16 %v251
        %v403 = vunpack.c.l.b16 %v252
        %v404 = vunpack.c.l.b16 %v253
        %v405 = vunpack.c.l.b16 %v254
        %v406 = vunpack.c.l.b16 %v255
        %v407 = vunpack.c.l.b16 %v256
        %v408 = vunpack.c.l.b16 %v257
        %v409 = vunpack.c.l.b16 %v258
        %v410 = vpack.c.b16 %v395, %v394
        %v411 = vpack.c.b16 %v397, %v396
        %v412 = vpack.c.b16 %v399, %v398
        %v413 = vpack.c.b16 %v401, %v400
        %v414 = vpack.c.b16 %v403, %v402
        %v415 = vpack.c.b16 %v405, %v404
        %v416 = vpack.c.b16 %v407, %v406
        %v417 = vpack.c.b16 %v409, %v408
        %426 = vmatprep.subr.bf16.mxu0 0
        %427 = vmatpush1.bf16.msra.mxu0 %v410
        %428 = vmatprep.subr.bf16.mxu0 0
        %429 = vmatpush1.bf16.msra.mxu0 %v411
        %430 = vmatprep.subr.bf16.mxu0 0
        %431 = vmatpush1.bf16.msra.mxu0 %v412
        %432 = vmatprep.subr.bf16.mxu0 0
        %433 = vmatpush1.bf16.msra.mxu0 %v413
        %434 = vmatprep.subr.bf16.mxu0 0
        %435 = vmatpush1.bf16.msra.mxu0 %v414
        %436 = vmatprep.subr.bf16.mxu0 0
        %437 = vmatpush1.bf16.msra.mxu0 %v415
        %438 = vmatprep.subr.bf16.mxu0 0
        %439 = vmatpush1.bf16.msra.mxu0 %v416
        %440 = vmatprep.subr.bf16.mxu0 0
        %441 = vmatpush1.bf16.msra.mxu0 %v417
        %442 = vmatprep.subr.bf16.mxu0 0
        %443 = vmatpush1.bf16.msra.mxu0 0
        %444 = vmatprep.subr.bf16.mxu0 0
        %445 = vmatpush1.bf16.msra.mxu0 0
        %446 = vmatprep.subr.bf16.mxu0 0
        %447 = vmatpush1.bf16.msra.mxu0 0
        %448 = vmatprep.subr.bf16.mxu0 0
        %449 = vmatpush1.bf16.msra.mxu0 0
        %450 = vmatprep.subr.bf16.mxu0 0
        %451 = vmatpush1.bf16.msra.mxu0 0
        %452 = vmatprep.subr.bf16.mxu0 0
        %453 = vmatpush1.bf16.msra.mxu0 0
        %454 = vmatprep.subr.bf16.mxu0 0
        %455 = vmatpush1.bf16.msra.mxu0 0
        %456 = vmatprep.subr.bf16.mxu0 0
        %457 = vmatpush1.bf16.msra.mxu0 0
        %458 = vmatprep.mubr.bf16.mxu0 0
        %459 = vmatmul.mubr.bf16.gmra.mrb[0].mxu0 %v377
        %v460 = vpop.f32.mrb[0].mxu0
        %v461 = vadd.f32 0.0, %v460
        %v462 = vpop.f32.mrb[0].mxu0
        %v463 = vpop.f32.mrb[0].mxu0
        %v464 = vpop.f32.mrb[0].mxu0
        %465 = vdwg.mxu0
        %v466 = vsub.f32 %v342, %v461
        %v467 = vstv %s348
        %v468 = vmul.f32 %v467, %v466
        %v469 = vadd.f32 %v376, %v468
        %s470 = ssub.f32 0.0, %s359
        %v471 = vstv %s470
        %v472 = vmax.f32 %v471, %v469
        %v473 = vstv %s359
        %v474 = vmin.f32 %v473, %v472
        %v475 = vsub.f32 %v469, %v474
        %v476 = vpack.c.bf16 %v475, %v475
        %477 = vmatprep.subr.bf16.mxu0 0
        %478 = vmatpush1.bf16.msra.mxu0 %v410
        %479 = vmatprep.subr.bf16.mxu0 0
        %480 = vmatpush1.bf16.msra.mxu0 %v411
        %481 = vmatprep.subr.bf16.mxu0 0
        %482 = vmatpush1.bf16.msra.mxu0 %v412
        %483 = vmatprep.subr.bf16.mxu0 0
        %484 = vmatpush1.bf16.msra.mxu0 %v413
        %485 = vmatprep.subr.bf16.mxu0 0
        %486 = vmatpush1.bf16.msra.mxu0 %v414
        %487 = vmatprep.subr.bf16.mxu0 0
        %488 = vmatpush1.bf16.msra.mxu0 %v415
        %489 = vmatprep.subr.bf16.mxu0 0
        %490 = vmatpush1.bf16.msra.mxu0 %v416
        %491 = vmatprep.subr.bf16.mxu0 0
        %492 = vmatpush1.bf16.msra.mxu0 %v417
        %493 = vmatprep.subr.bf16.mxu0 0
        %494 = vmatpush1.bf16.msra.mxu0 0
        %495 = vmatprep.subr.bf16.mxu0 0
        %496 = vmatpush1.bf16.msra.mxu0 0
        %497 = vmatprep.subr.bf16.mxu0 0
        %498 = vmatpush1.bf16.msra.mxu0 0
        %499 = vmatprep.subr.bf16.mxu0 0
        %500 = vmatpush1.bf16.msra.mxu0 0
        %501 = vmatprep.subr.bf16.mxu0 0
        %502 = vmatpush1.bf16.msra.mxu0 0
        %503 = vmatprep.subr.bf16.mxu0 0
        %504 = vmatpush1.bf16.msra.mxu0 0
        %505 = vmatprep.subr.bf16.mxu0 0
        %506 = vmatpush1.bf16.msra.mxu0 0
        %507 = vmatprep.subr.bf16.mxu0 0
        %508 = vmatpush1.bf16.msra.mxu0 0
        %509 = vmatprep.mubr.bf16.mxu0 0
        %510 = vmatmul.mubr.bf16.gmra.mrb[0].mxu0 %v476
        %v511 = vpop.f32.mrb[0].mxu0
        %v512 = vadd.f32 0.0, %v511
        %v513 = vpop.f32.mrb[0].mxu0
        %v514 = vpop.f32.mrb[0].mxu0
        %v515 = vpop.f32.mrb[0].mxu0
        %516 = vdwg.mxu0
        %v517 = vsub.f32 %v342, %v512
        %v518 = vstv %s349
        %v519 = vmul.f32 %v518, %v517
        %v520 = vadd.f32 %v475, %v519
        %s521 = ssub.f32 0.0, %s360
        %v522 = vstv %s521
        %v523 = vmax.f32 %v522, %v520
        %v524 = vstv %s360
        %v525 = vmin.f32 %v524, %v523
        %v526 = vsub.f32 %v520, %v525
        %v527 = vpack.c.bf16 %v526, %v526
        %528 = vmatprep.subr.bf16.mxu0 0
        %529 = vmatpush1.bf16.msra.mxu0 %v410
        %530 = vmatprep.subr.bf16.mxu0 0
        %531 = vmatpush1.bf16.msra.mxu0 %v411
        %532 = vmatprep.subr.bf16.mxu0 0
        %533 = vmatpush1.bf16.msra.mxu0 %v412
        %534 = vmatprep.subr.bf16.mxu0 0
        %535 = vmatpush1.bf16.msra.mxu0 %v413
        %536 = vmatprep.subr.bf16.mxu0 0
        %537 = vmatpush1.bf16.msra.mxu0 %v414
        %538 = vmatprep.subr.bf16.mxu0 0
        %539 = vmatpush1.bf16.msra.mxu0 %v415
        %540 = vmatprep.subr.bf16.mxu0 0
        %541 = vmatpush1.bf16.msra.mxu0 %v416
        %542 = vmatprep.subr.bf16.mxu0 0
        %543 = vmatpush1.bf16.msra.mxu0 %v417
        %544 = vmatprep.subr.bf16.mxu0 0
        %545 = vmatpush1.bf16.msra.mxu0 0
        %546 = vmatprep.subr.bf16.mxu0 0
        %547 = vmatpush1.bf16.msra.mxu0 0
        %548 = vmatprep.subr.bf16.mxu0 0
        %549 = vmatpush1.bf16.msra.mxu0 0
        %550 = vmatprep.subr.bf16.mxu0 0
        %551 = vmatpush1.bf16.msra.mxu0 0
        %552 = vmatprep.subr.bf16.mxu0 0
        %553 = vmatpush1.bf16.msra.mxu0 0
        %554 = vmatprep.subr.bf16.mxu0 0
        %555 = vmatpush1.bf16.msra.mxu0 0
        %556 = vmatprep.subr.bf16.mxu0 0
        %557 = vmatpush1.bf16.msra.mxu0 0
        %558 = vmatprep.subr.bf16.mxu0 0
        %559 = vmatpush1.bf16.msra.mxu0 0
        %560 = vmatprep.mubr.bf16.mxu0 0
        %561 = vmatmul.mubr.bf16.gmra.mrb[0].mxu0 %v527
        %v562 = vpop.f32.mrb[0].mxu0
        %v563 = vadd.f32 0.0, %v562
        %v564 = vpop.f32.mrb[0].mxu0
        %v565 = vpop.f32.mrb[0].mxu0
        %v566 = vpop.f32.mrb[0].mxu0
        %567 = vdwg.mxu0
        %v568 = vsub.f32 %v342, %v563
        %v569 = vstv %s350
        %v570 = vmul.f32 %v569, %v568
        %v571 = vadd.f32 %v526, %v570
        %s572 = ssub.f32 0.0, %s361
        %v573 = vstv %s572
        %v574 = vmax.f32 %v573, %v571
        %v575 = vstv %s361
        %v576 = vmin.f32 %v575, %v574
        %v577 = vsub.f32 %v571, %v576
        %v578 = vpack.c.bf16 %v577, %v577
        %579 = vmatprep.subr.bf16.mxu0 0
        %580 = vmatpush1.bf16.msra.mxu0 %v410
        %581 = vmatprep.subr.bf16.mxu0 0
        %582 = vmatpush1.bf16.msra.mxu0 %v411
        %583 = vmatprep.subr.bf16.mxu0 0
        %584 = vmatpush1.bf16.msra.mxu0 %v412
        %585 = vmatprep.subr.bf16.mxu0 0
        %586 = vmatpush1.bf16.msra.mxu0 %v413
        %587 = vmatprep.subr.bf16.mxu0 0
        %588 = vmatpush1.bf16.msra.mxu0 %v414
        %589 = vmatprep.subr.bf16.mxu0 0
        %590 = vmatpush1.bf16.msra.mxu0 %v415
        %591 = vmatprep.subr.bf16.mxu0 0
        %592 = vmatpush1.bf16.msra.mxu0 %v416
        %593 = vmatprep.subr.bf16.mxu0 0
        %594 = vmatpush1.bf16.msra.mxu0 %v417
        %595 = vmatprep.subr.bf16.mxu0 0
        %596 = vmatpush1.bf16.msra.mxu0 0
        %597 = vmatprep.subr.bf16.mxu0 0
        %598 = vmatpush1.bf16.msra.mxu0 0
        %599 = vmatprep.subr.bf16.mxu0 0
        %600 = vmatpush1.bf16.msra.mxu0 0
        %601 = vmatprep.subr.bf16.mxu0 0
        %602 = vmatpush1.bf16.msra.mxu0 0
        %603 = vmatprep.subr.bf16.mxu0 0
        %604 = vmatpush1.bf16.msra.mxu0 0
        %605 = vmatprep.subr.bf16.mxu0 0
        %606 = vmatpush1.bf16.msra.mxu0 0
        %607 = vmatprep.subr.bf16.mxu0 0
        %608 = vmatpush1.bf16.msra.mxu0 0
        %609 = vmatprep.subr.bf16.mxu0 0
        %610 = vmatpush1.bf16.msra.mxu0 0
        %611 = vmatprep.mubr.bf16.mxu0 0
        %612 = vmatmul.mubr.bf16.gmra.mrb[0].mxu0 %v578
        %v613 = vpop.f32.mrb[0].mxu0
        %v614 = vadd.f32 0.0, %v613
        %v615 = vpop.f32.mrb[0].mxu0
        %v616 = vpop.f32.mrb[0].mxu0
        %v617 = vpop.f32.mrb[0].mxu0
        %618 = vdwg.mxu0
        %v619 = vsub.f32 %v342, %v614
        %v620 = vstv %s351
        %v621 = vmul.f32 %v620, %v619
        %v622 = vadd.f32 %v577, %v621
        %s623 = ssub.f32 0.0, %s362
        %v624 = vstv %s623
        %v625 = vmax.f32 %v624, %v622
        %v626 = vstv %s362
        %v627 = vmin.f32 %v626, %v625
        %v628 = vsub.f32 %v622, %v627
        %v629 = vpack.c.bf16 %v628, %v628
        %630 = vmatprep.subr.bf16.mxu0 0
        %631 = vmatpush1.bf16.msra.mxu0 %v410
        %632 = vmatprep.subr.bf16.mxu0 0
        %633 = vmatpush1.bf16.msra.mxu0 %v411
        %634 = vmatprep.subr.bf16.mxu0 0
        %635 = vmatpush1.bf16.msra.mxu0 %v412
        %636 = vmatprep.subr.bf16.mxu0 0
        %637 = vmatpush1.bf16.msra.mxu0 %v413
        %638 = vmatprep.subr.bf16.mxu0 0
        %639 = vmatpush1.bf16.msra.mxu0 %v414
        %640 = vmatprep.subr.bf16.mxu0 0
        %641 = vmatpush1.bf16.msra.mxu0 %v415
        %642 = vmatprep.subr.bf16.mxu0 0
        %643 = vmatpush1.bf16.msra.mxu0 %v416
        %644 = vmatprep.subr.bf16.mxu0 0
        %645 = vmatpush1.bf16.msra.mxu0 %v417
        %646 = vmatprep.subr.bf16.mxu0 0
        %647 = vmatpush1.bf16.msra.mxu0 0
        %648 = vmatprep.subr.bf16.mxu0 0
        %649 = vmatpush1.bf16.msra.mxu0 0
        %650 = vmatprep.subr.bf16.mxu0 0
        %651 = vmatpush1.bf16.msra.mxu0 0
        %652 = vmatprep.subr.bf16.mxu0 0
        %653 = vmatpush1.bf16.msra.mxu0 0
        %654 = vmatprep.subr.bf16.mxu0 0
        %655 = vmatpush1.bf16.msra.mxu0 0
        %656 = vmatprep.subr.bf16.mxu0 0
        %657 = vmatpush1.bf16.msra.mxu0 0
        %658 = vmatprep.subr.bf16.mxu0 0
        %659 = vmatpush1.bf16.msra.mxu0 0
        %660 = vmatprep.subr.bf16.mxu0 0
        %661 = vmatpush1.bf16.msra.mxu0 0
        %662 = vmatprep.mubr.bf16.mxu0 0
        %663 = vmatmul.mubr.bf16.gmra.mrb[0].mxu0 %v629
        %v664 = vpop.f32.mrb[0].mxu0
        %v665 = vadd.f32 0.0, %v664
        %v666 = vpop.f32.mrb[0].mxu0
        %v667 = vpop.f32.mrb[0].mxu0
        %v668 = vpop.f32.mrb[0].mxu0
        %669 = vdwg.mxu0
        %v670 = vsub.f32 %v342, %v665
        %v671 = vstv %s352
        %v672 = vmul.f32 %v671, %v670
        %v673 = vadd.f32 %v628, %v672
        %s674 = ssub.f32 0.0, %s363
        %v675 = vstv %s674
        %v676 = vmax.f32 %v675, %v673
        %v677 = vstv %s363
        %v678 = vmin.f32 %v677, %v676
        %v679 = vsub.f32 %v673, %v678
        %v680 = vpack.c.bf16 %v679, %v679
        %681 = vmatprep.subr.bf16.mxu0 0
        %682 = vmatpush1.bf16.msra.mxu0 %v410
        %683 = vmatprep.subr.bf16.mxu0 0
        %684 = vmatpush1.bf16.msra.mxu0 %v411
        %685 = vmatprep.subr.bf16.mxu0 0
        %686 = vmatpush1.bf16.msra.mxu0 %v412
        %687 = vmatprep.subr.bf16.mxu0 0
        %688 = vmatpush1.bf16.msra.mxu0 %v413
        %689 = vmatprep.subr.bf16.mxu0 0
        %690 = vmatpush1.bf16.msra.mxu0 %v414
        %691 = vmatprep.subr.bf16.mxu0 0
        %692 = vmatpush1.bf16.msra.mxu0 %v415
        %693 = vmatprep.subr.bf16.mxu0 0
        %694 = vmatpush1.bf16.msra.mxu0 %v416
        %695 = vmatprep.subr.bf16.mxu0 0
        %696 = vmatpush1.bf16.msra.mxu0 %v417
        %697 = vmatprep.subr.bf16.mxu0 0
        %698 = vmatpush1.bf16.msra.mxu0 0
        %699 = vmatprep.subr.bf16.mxu0 0
        %700 = vmatpush1.bf16.msra.mxu0 0
        %701 = vmatprep.subr.bf16.mxu0 0
        %702 = vmatpush1.bf16.msra.mxu0 0
        %703 = vmatprep.subr.bf16.mxu0 0
        %704 = vmatpush1.bf16.msra.mxu0 0
        %705 = vmatprep.subr.bf16.mxu0 0
        %706 = vmatpush1.bf16.msra.mxu0 0
        %707 = vmatprep.subr.bf16.mxu0 0
        %708 = vmatpush1.bf16.msra.mxu0 0
        %709 = vmatprep.subr.bf16.mxu0 0
        %710 = vmatpush1.bf16.msra.mxu0 0
        %711 = vmatprep.subr.bf16.mxu0 0
        %712 = vmatpush1.bf16.msra.mxu0 0
        %713 = vmatprep.mubr.bf16.mxu0 0
        %714 = vmatmul.mubr.bf16.gmra.mrb[0].mxu0 %v680
        %v715 = vpop.f32.mrb[0].mxu0
        %v716 = vadd.f32 0.0, %v715
        %v717 = vpop.f32.mrb[0].mxu0
        %v718 = vpop.f32.mrb[0].mxu0
        %v719 = vpop.f32.mrb[0].mxu0
        %720 = vdwg.mxu0
        %v721 = vsub.f32 %v342, %v716
        %v722 = vstv %s353
        %v723 = vmul.f32 %v722, %v721
        %v724 = vadd.f32 %v679, %v723
        %s725 = ssub.f32 0.0, %s364
        %v726 = vstv %s725
        %v727 = vmax.f32 %v726, %v724
        %v728 = vstv %s364
        %v729 = vmin.f32 %v728, %v727
        %v730 = vsub.f32 %v724, %v729
        %v731 = vpack.c.bf16 %v730, %v730
        %732 = vmatprep.subr.bf16.mxu0 0
        %733 = vmatpush1.bf16.msra.mxu0 %v410
        %734 = vmatprep.subr.bf16.mxu0 0
        %735 = vmatpush1.bf16.msra.mxu0 %v411
        %736 = vmatprep.subr.bf16.mxu0 0
        %737 = vmatpush1.bf16.msra.mxu0 %v412
        %738 = vmatprep.subr.bf16.mxu0 0
        %739 = vmatpush1.bf16.msra.mxu0 %v413
        %740 = vmatprep.subr.bf16.mxu0 0
        %741 = vmatpush1.bf16.msra.mxu0 %v414
        %742 = vmatprep.subr.bf16.mxu0 0
        %743 = vmatpush1.bf16.msra.mxu0 %v415
        %744 = vmatprep.subr.bf16.mxu0 0
        %745 = vmatpush1.bf16.msra.mxu0 %v416
        %746 = vmatprep.subr.bf16.mxu0 0
        %747 = vmatpush1.bf16.msra.mxu0 %v417
        %748 = vmatprep.subr.bf16.mxu0 0
        %749 = vmatpush1.bf16.msra.mxu0 0
        %750 = vmatprep.subr.bf16.mxu0 0
        %751 = vmatpush1.bf16.msra.mxu0 0
        %752 = vmatprep.subr.bf16.mxu0 0
        %753 = vmatpush1.bf16.msra.mxu0 0
        %754 = vmatprep.subr.bf16.mxu0 0
        %755 = vmatpush1.bf16.msra.mxu0 0
        %756 = vmatprep.subr.bf16.mxu0 0
        %757 = vmatpush1.bf16.msra.mxu0 0
        %758 = vmatprep.subr.bf16.mxu0 0
        %759 = vmatpush1.bf16.msra.mxu0 0
        %760 = vmatprep.subr.bf16.mxu0 0
        %761 = vmatpush1.bf16.msra.mxu0 0
        %762 = vmatprep.subr.bf16.mxu0 0
        %763 = vmatpush1.bf16.msra.mxu0 0
        %764 = vmatprep.mubr.bf16.mxu0 0
        %765 = vmatmul.mubr.bf16.gmra.mrb[0].mxu0 %v731
        %v766 = vpop.f32.mrb[0].mxu0
        %v767 = vadd.f32 0.0, %v766
        %v768 = vpop.f32.mrb[0].mxu0
        %v769 = vpop.f32.mrb[0].mxu0
        %v770 = vpop.f32.mrb[0].mxu0
        %771 = vdwg.mxu0
        %v772 = vsub.f32 %v342, %v767
        %v773 = vstv %s354
        %v774 = vmul.f32 %v773, %v772
        %v775 = vadd.f32 %v730, %v774
        %s776 = ssub.f32 0.0, %s365
        %v777 = vstv %s776
        %v778 = vmax.f32 %v777, %v775
        %v779 = vstv %s365
        %v780 = vmin.f32 %v779, %v778
        %v781 = vsub.f32 %v775, %v780
        %v782 = vpack.c.bf16 %v781, %v781
        %783 = vmatprep.subr.bf16.mxu0 0
        %784 = vmatpush1.bf16.msra.mxu0 %v410
        %785 = vmatprep.subr.bf16.mxu0 0
        %786 = vmatpush1.bf16.msra.mxu0 %v411
        %787 = vmatprep.subr.bf16.mxu0 0
        %788 = vmatpush1.bf16.msra.mxu0 %v412
        %789 = vmatprep.subr.bf16.mxu0 0
        %790 = vmatpush1.bf16.msra.mxu0 %v413
        %791 = vmatprep.subr.bf16.mxu0 0
        %792 = vmatpush1.bf16.msra.mxu0 %v414
        %793 = vmatprep.subr.bf16.mxu0 0
        %794 = vmatpush1.bf16.msra.mxu0 %v415
        %795 = vmatprep.subr.bf16.mxu0 0
        %796 = vmatpush1.bf16.msra.mxu0 %v416
        %797 = vmatprep.subr.bf16.mxu0 0
        %798 = vmatpush1.bf16.msra.mxu0 %v417
        %799 = vmatprep.subr.bf16.mxu0 0
        %800 = vmatpush1.bf16.msra.mxu0 0
        %801 = vmatprep.subr.bf16.mxu0 0
        %802 = vmatpush1.bf16.msra.mxu0 0
        %803 = vmatprep.subr.bf16.mxu0 0
        %804 = vmatpush1.bf16.msra.mxu0 0
        %805 = vmatprep.subr.bf16.mxu0 0
        %806 = vmatpush1.bf16.msra.mxu0 0
        %807 = vmatprep.subr.bf16.mxu0 0
        %808 = vmatpush1.bf16.msra.mxu0 0
        %809 = vmatprep.subr.bf16.mxu0 0
        %810 = vmatpush1.bf16.msra.mxu0 0
        %811 = vmatprep.subr.bf16.mxu0 0
        %812 = vmatpush1.bf16.msra.mxu0 0
        %813 = vmatprep.subr.bf16.mxu0 0
        %814 = vmatpush1.bf16.msra.mxu0 0
        %815 = vmatprep.mubr.bf16.mxu0 0
        %816 = vmatmul.mubr.bf16.gmra.mrb[0].mxu0 %v782
        %v817 = vpop.f32.mrb[0].mxu0
        %v818 = vadd.f32 0.0, %v817
        %v819 = vpop.f32.mrb[0].mxu0
        %v820 = vpop.f32.mrb[0].mxu0
        %v821 = vpop.f32.mrb[0].mxu0
        %822 = vdwg.mxu0
        %v823 = vsub.f32 %v342, %v818
        %v824 = vstv %s355
        %v825 = vmul.f32 %v824, %v823
        %v826 = vadd.f32 %v781, %v825
        %s827 = ssub.f32 0.0, %s366
        %v828 = vstv %s827
        %v829 = vmax.f32 %v828, %v826
        %v830 = vstv %s366
        %v831 = vmin.f32 %v830, %v829
        %v832 = vsub.f32 %v826, %v831
        %v833 = vpack.c.bf16 %v832, %v832
        %834 = vmatprep.subr.bf16.mxu0 0
        %835 = vmatpush1.bf16.msra.mxu0 %v410
        %836 = vmatprep.subr.bf16.mxu0 0
        %837 = vmatpush1.bf16.msra.mxu0 %v411
        %838 = vmatprep.subr.bf16.mxu0 0
        %839 = vmatpush1.bf16.msra.mxu0 %v412
        %840 = vmatprep.subr.bf16.mxu0 0
        %841 = vmatpush1.bf16.msra.mxu0 %v413
        %842 = vmatprep.subr.bf16.mxu0 0
        %843 = vmatpush1.bf16.msra.mxu0 %v414
        %844 = vmatprep.subr.bf16.mxu0 0
        %845 = vmatpush1.bf16.msra.mxu0 %v415
        %846 = vmatprep.subr.bf16.mxu0 0
        %847 = vmatpush1.bf16.msra.mxu0 %v416
        %848 = vmatprep.subr.bf16.mxu0 0
        %849 = vmatpush1.bf16.msra.mxu0 %v417
        %850 = vmatprep.subr.bf16.mxu0 0
        %851 = vmatpush1.bf16.msra.mxu0 0
        %852 = vmatprep.subr.bf16.mxu0 0
        %853 = vmatpush1.bf16.msra.mxu0 0
        %854 = vmatprep.subr.bf16.mxu0 0
        %855 = vmatpush1.bf16.msra.mxu0 0
        %856 = vmatprep.subr.bf16.mxu0 0
        %857 = vmatpush1.bf16.msra.mxu0 0
        %858 = vmatprep.subr.bf16.mxu0 0
        %859 = vmatpush1.bf16.msra.mxu0 0
        %860 = vmatprep.subr.bf16.mxu0 0
        %861 = vmatpush1.bf16.msra.mxu0 0
        %862 = vmatprep.subr.bf16.mxu0 0
        %863 = vmatpush1.bf16.msra.mxu0 0
        %864 = vmatprep.subr.bf16.mxu0 0
        %865 = vmatpush1.bf16.msra.mxu0 0
        %866 = vmatprep.mubr.bf16.mxu0 0
        %867 = vmatmul.mubr.bf16.gmra.mrb[0].mxu0 %v833
        %v868 = vpop.f32.mrb[0].mxu0
        %v869 = vadd.f32 0.0, %v868
        %v870 = vpop.f32.mrb[0].mxu0
        %v871 = vpop.f32.mrb[0].mxu0
        %v872 = vpop.f32.mrb[0].mxu0
        %873 = vdwg.mxu0
        %v874 = vsub.f32 %v342, %v869
        %v875 = vstv %s356
        %v876 = vmul.f32 %v875, %v874
        %v877 = vadd.f32 %v832, %v876
        %s878 = ssub.f32 0.0, %s367
        %v879 = vstv %s878
        %v880 = vmax.f32 %v879, %v877
        %v881 = vstv %s367
        %v882 = vmin.f32 %v881, %v880
        %v883 = vsub.f32 %v877, %v882
        %v884 = vpack.c.bf16 %v883, %v883
        %885 = vmatprep.subr.bf16.mxu0 0
        %886 = vmatpush1.bf16.msra.mxu0 %v410
        %887 = vmatprep.subr.bf16.mxu0 0
        %888 = vmatpush1.bf16.msra.mxu0 %v411
        %889 = vmatprep.subr.bf16.mxu0 0
        %890 = vmatpush1.bf16.msra.mxu0 %v412
        %891 = vmatprep.subr.bf16.mxu0 0
        %892 = vmatpush1.bf16.msra.mxu0 %v413
        %893 = vmatprep.subr.bf16.mxu0 0
        %894 = vmatpush1.bf16.msra.mxu0 %v414
        %895 = vmatprep.subr.bf16.mxu0 0
        %896 = vmatpush1.bf16.msra.mxu0 %v415
        %897 = vmatprep.subr.bf16.mxu0 0
        %898 = vmatpush1.bf16.msra.mxu0 %v416
        %899 = vmatprep.subr.bf16.mxu0 0
        %900 = vmatpush1.bf16.msra.mxu0 %v417
        %901 = vmatprep.subr.bf16.mxu0 0
        %902 = vmatpush1.bf16.msra.mxu0 0
        %903 = vmatprep.subr.bf16.mxu0 0
        %904 = vmatpush1.bf16.msra.mxu0 0
        %905 = vmatprep.subr.bf16.mxu0 0
        %906 = vmatpush1.bf16.msra.mxu0 0
        %907 = vmatprep.subr.bf16.mxu0 0
        %908 = vmatpush1.bf16.msra.mxu0 0
        %909 = vmatprep.subr.bf16.mxu0 0
        %910 = vmatpush1.bf16.msra.mxu0 0
        %911 = vmatprep.subr.bf16.mxu0 0
        %912 = vmatpush1.bf16.msra.mxu0 0
        %913 = vmatprep.subr.bf16.mxu0 0
        %914 = vmatpush1.bf16.msra.mxu0 0
        %915 = vmatprep.subr.bf16.mxu0 0
        %916 = vmatpush1.bf16.msra.mxu0 0
        %917 = vmatprep.mubr.bf16.mxu0 0
        %918 = vmatmul.mubr.bf16.gmra.mrb[0].mxu0 %v884
        %v919 = vpop.f32.mrb[0].mxu0
        %v920 = vadd.f32 0.0, %v919
        %v921 = vpop.f32.mrb[0].mxu0
        %v922 = vpop.f32.mrb[0].mxu0
        %v923 = vpop.f32.mrb[0].mxu0
        %924 = vdwg.mxu0
        %v925 = vsub.f32 %v342, %v920
        %v926 = vstv %s357
        %v927 = vmul.f32 %v926, %v925
        %v928 = vadd.f32 %v883, %v927
        %s929 = ssub.f32 0.0, %s368
        %v930 = vstv %s929
        %v931 = vmax.f32 %v930, %v928
        %v932 = vstv %s368
        %v933 = vmin.f32 %v932, %v931
        %v934 = vsub.f32 %v928, %v933
        %935 = vst [vmem:[%s224] sm:$0xff] %v934
        %s936 = sand.u32 %s107, 1
        %s937 = scalar_lea.sflag [#allocation7], %s936
        %s938 = sand.u32 %s107, 1
        %s939 = smul.addr %s938, 8
        %s940 = scalar_lea.vmem [#allocation11], %s939
        // Predicated region
        $region45: #{tpu_custom_call.1} parent=31 // pred_check
          %p941 = pneg %p117
        $region46: #{tpu_custom_call.1} parent=31 // pred_check_branch
          %943 = sbr.rel (%p941) target = $region48
        $region47: #{tpu_custom_call.1} parent=31 // pred_region
          %s945 = ssub.s32 128, 128
          %946 = vsyncadd %s937, %s945
          %s947 = smul.addr %s31, 128
          %s948 = scalar_lea.hbm %s5, %s947
          %s950 = sshll.u32 %s940, 4
          %s951 = int_to_ptr.vmem [resolvable:$true] %s950
          %953 = dma.vmem_to_hbm [thread:$0]  %s951, 128, %s948, %s937
        $region48: #{tpu_custom_call.1} parent=31 // pred_fallthru
          _
      $region32: #{tpu_custom_call.1} parent=5 // pred_fallthru
        _
      %p954 = scmp.le.s32.totalorder 2, %s26
      // Predicated region
      $region49: #{tpu_custom_call.1} parent=5 // pred_check
        %p955 = pneg %p954
      $region50: #{tpu_custom_call.1} parent=5 // pred_check_branch
        %957 = sbr.rel (%p955) target = $region52
      $region51: #{tpu_custom_call.1} parent=5 // pred_region
        %s958 = ssub.s32 %s26, 2
        // Predicated region
        $region53: #{tpu_custom_call.1} parent=51 // pred_check
          %p959 = pneg %p123
        $region54: #{tpu_custom_call.1} parent=51 // pred_check_branch
          %961 = sbr.rel (%p959) target = $region56
        $region55: #{tpu_custom_call.1} parent=51 // pred_region
          %s962 = sand.u32 %s108, 1
          %s963 = scalar_lea.sflag [#allocation7], %s962
          %s964 = sand.u32 %s108, 1
          %s965 = smul.addr %s964, 8
          %s966 = scalar_lea.vmem [#allocation11], %s965
          %967 = dma.done %s963, 128
        $region56: #{tpu_custom_call.1} parent=51 // pred_fallthru
          _
      $region52: #{tpu_custom_call.1} parent=5 // pred_fallthru
        _
    $region6: #{tpu_custom_call.1} parent=1 // loop_footer
      %s30 = sadd.s32 1, %s26
    $region7: #{tpu_custom_call.1} parent=1 // loop_footer_branch
      %25 = sbr.rel target = $region3
    $region8: #{tpu_custom_call.1} parent=1 // loop_exit
      _
    %968 = vsyncpa [#allocation6], 1
    %s969 = scalar_lea.sflag [#allocation6], 1
    %970 = vsyncpa %s969, 1
    %971 = vsyncpa [#allocation9], 1
    %972 = vsyncpa [#allocation7], 1
    %s973 = scalar_lea.sflag [#allocation7], 1
    %974 = vsyncpa %s973, 1

</llo_original>
